<compile_context>
chip_gen: v7x
topology: tpu7x:2x2x1
jax: 0.10.0
libtpu: 0.0.40
codegen_flags: <defaults>
</compile_context>

<pallas_src>
import functools

import jax
import jax.numpy as jnp
from jax.experimental import pallas as pl
from jax.experimental.pallas import tpu as pltpu

# --- model hyperparameters (synthetic, small) ---
SEQ_LEN = 8
VOCAB_SIZE = 4
NUM_HID = 32
BATCH = 2

LEAKY_SLOPE = 0.01  # nn.LeakyReLU default


def _round_up(x, m):
    return ((x + m - 1) // m) * m


def tb_mlp_kernel(x_ref, w1_ref, b1_ref, w2_ref, b2_ref, logits_ref):
    """One batch tile of the 2-layer MLP; fused (TILE_B, 2*V) logits output.

    x_ref:      (TILE_B, SEQ_LEN)   VMEM (f32 or bf16)
    w1_ref:     (SEQ_LEN, H)        VMEM, resident across grid steps
    b1_ref:     (1, H)              VMEM (f32), resident
    w2_ref:     (H, 2*V)            VMEM, resident
    b2_ref:     (1, 2*V)            VMEM (f32), resident
    logits_ref: (TILE_B, 2*V)       VMEM out (f32)
    """
    x = x_ref[...]
    # hidden = LeakyReLU(x @ W1 + b1)  -- MXU matmul, f32 accumulate, f32 elementwise
    h = jnp.dot(x, w1_ref[...], preferred_element_type=jnp.float32) + b1_ref[...]
    h = jnp.where(h > 0, h, LEAKY_SLOPE * h)
    # logits = hidden @ W2 + b2  (cast activations to match W2 dtype for the MXU)
    logits = (
        jnp.dot(h.astype(w2_ref.dtype), w2_ref[...], preferred_element_type=jnp.float32)
        + b2_ref[...]
    )
    logits_ref[...] = logits.astype(logits_ref.dtype)


@functools.partial(jax.jit, static_argnames=("tile_b", "use_bf16"))
def tb_model_forward(x, w1, b1, w2, b2, *, tile_b=512, use_bf16=False):
    """Forward pass. Returns (P_F, P_B), each (batch, VOCAB_SIZE).

    x:  (batch, SEQ_LEN) f32
    w1: (SEQ_LEN, H), b1: (1, H), w2: (H, 2*V), b2: (1, 2*V)   [weights stored as in,out]
    """
    B, S = x.shape
    H = w1.shape[1]
    V2 = w2.shape[1]  # 2 * VOCAB_SIZE
    V = V2 // 2

    # Pick a sublane-legal batch tile: multiple of 8, no larger than needed.
    tb = min(tile_b, _round_up(B, 8))
    tb = _round_up(tb, 8)
    padded_B = _round_up(B, tb)
    if padded_B != B:
        x = jnp.pad(x, ((0, padded_B - B), (0, 0)))

    if use_bf16:
        # Feed bf16 into the MXU (halves x DMA bytes at large batch); keep biases,
        # accumulation, and elementwise math in f32 (v5e has no bf16 VPU path).
        x = x.astype(jnp.bfloat16)
        w1 = w1.astype(jnp.bfloat16)
        w2 = w2.astype(jnp.bfloat16)

    grid = (padded_B // tb,)

    in_specs = [
        pl.BlockSpec((tb, S), lambda i: (i, 0)),          # x: tiled over batch
        pl.BlockSpec((S, H), lambda i: (0, 0)),           # W1: VMEM-resident
        pl.BlockSpec((1, H), lambda i: (0, 0)),           # b1: VMEM-resident
        pl.BlockSpec((H, V2), lambda i: (0, 0)),          # W2: VMEM-resident
        pl.BlockSpec((1, V2), lambda i: (0, 0)),          # b2: VMEM-resident
    ]
    out_specs = pl.BlockSpec((tb, V2), lambda i: (i, 0))  # fused logits, lane-dense

    logits = pl.pallas_call(
        tb_mlp_kernel,
        out_shape=jax.ShapeDtypeStruct((padded_B, V2), jnp.float32),
        grid=grid,
        in_specs=in_specs,
        out_specs=out_specs,
        compiler_params=pltpu.CompilerParams(
            dimension_semantics=("parallel",),  # batch grid axis -> megacore on v7x
        ),
    )(x, w1, b1, w2, b2)

    logits = logits[:B]
    return logits[:, :V], logits[:, V:]


def init_params(key):
    """Deterministic synthetic parameter init (PyTorch-Linear-style uniform ranges)."""
    k1, k2, k3, k4 = jax.random.split(key, 4)
    bound1 = 1.0 / jnp.sqrt(SEQ_LEN)
    bound2 = 1.0 / jnp.sqrt(NUM_HID)
    # Stored as [in, out] (transpose of PyTorch's [out, in]) so the kernel does x @ W.
    w1 = jax.random.uniform(k1, (SEQ_LEN, NUM_HID), jnp.float32, -bound1, bound1)
    b1 = jax.random.uniform(k2, (1, NUM_HID), jnp.float32, -bound1, bound1)
    w2 = jax.random.uniform(k3, (NUM_HID, VOCAB_SIZE * 2), jnp.float32, -bound2, bound2)
    b2 = jax.random.uniform(k4, (1, VOCAB_SIZE * 2), jnp.float32, -bound2, bound2)
    logZ = jnp.ones((1,), jnp.float32)  # parameter exists in the module; unused in forward
    return w1, b1, w2, b2, logZ


def reference_forward(x, w1, b1, w2, b2):
    h = x @ w1 + b1
    h = jnp.where(h > 0, h, LEAKY_SLOPE * h)
    logits = h @ w2 + b2
    return logits[:, :VOCAB_SIZE], logits[:, VOCAB_SIZE:]


if __name__ == "__main__":
    key = jax.random.PRNGKey(0)
    kx, kp, kbig = jax.random.split(key, 3)
    w1, b1, w2, b2, logZ = init_params(kp)

    # --- small demo at module-implied shapes (batch=2, seq=8) ---
    x = jax.random.normal(kx, (BATCH, SEQ_LEN), jnp.float32)
    p_f, p_b = tb_model_forward(x, w1, b1, w2, b2)
    jax.block_until_ready((p_f, p_b))

    ref_f, ref_b = reference_forward(x, w1, b1, w2, b2)
    assert p_f.shape == (BATCH, VOCAB_SIZE) and p_b.shape == (BATCH, VOCAB_SIZE)
    assert jnp.allclose(p_f, ref_f, atol=1e-5, rtol=1e-5)
    assert jnp.allclose(p_b, ref_b, atol=1e-5, rtol=1e-5)

    # --- exercise the batch grid (multi-step, ragged batch + padding) in f32 ---
    xb = jax.random.normal(kbig, (1037, SEQ_LEN), jnp.float32)
    pf_b, pb_b = tb_model_forward(xb, w1, b1, w2, b2, tile_b=256)
    jax.block_until_ready((pf_b, pb_b))
    rf_b, rb_b = reference_forward(xb, w1, b1, w2, b2)
    assert jnp.allclose(pf_b, rf_b, atol=1e-5, rtol=1e-5)
    assert jnp.allclose(pb_b, rb_b, atol=1e-5, rtol=1e-5)

    # TODO(synk): get_action (Categorical sampling) and the logZ parameter are not part
    # of the forward pass and are intentionally not implemented as Pallas kernels.
    print("KERNEL_OK")
</pallas_src>

<mosaic_0001>
module attributes {stable_mosaic.version = 11 : i64} {
  func.func @tb_mlp_kernel(%arg0: i32, %arg1: memref<8x8xf32, #tpu.memory_space<vmem>>, %arg2: memref<8x32xf32, #tpu.memory_space<vmem>>, %arg3: memref<1x32xf32, #tpu.memory_space<vmem>>, %arg4: memref<32x8xf32, #tpu.memory_space<vmem>>, %arg5: memref<1x8xf32, #tpu.memory_space<vmem>>, %arg6: memref<8x8xf32, #tpu.memory_space<vmem>>) attributes {dimension_semantics = [#tpu.dimension_semantics<parallel>], iteration_bounds = array<i64: 1>, scalar_prefetch = 0 : i64, scratch_operands = 0 : i64, tpu.core_type = #tpu.core_type<tc>, window_params = [{transform_indices = @transform_0, window_bounds = array<i64: 8, 8>}, {pipeline_mode = #tpu.pipeline_mode<synchronous>, transform_indices = @transform_1, window_bounds = array<i64: 8, 32>}, {pipeline_mode = #tpu.pipeline_mode<synchronous>, transform_indices = @transform_2, window_bounds = array<i64: 1, 32>}, {pipeline_mode = #tpu.pipeline_mode<synchronous>, transform_indices = @transform_3, window_bounds = array<i64: 32, 8>}, {pipeline_mode = #tpu.pipeline_mode<synchronous>, transform_indices = @transform_4, window_bounds = array<i64: 1, 8>}, {transform_indices = @transform_5, window_bounds = array<i64: 8, 8>}]} {
    %c0 = arith.constant 0 : index
    %c0_0 = arith.constant 0 : index
    %0 = vector.load %arg1[%c0, %c0_0] : memref<8x8xf32, #tpu.memory_space<vmem>>, vector<8x8xf32>
    %c0_1 = arith.constant 0 : index
    %c0_2 = arith.constant 0 : index
    %1 = vector.load %arg2[%c0_1, %c0_2] : memref<8x32xf32, #tpu.memory_space<vmem>>, vector<8x32xf32>
    %cst = arith.constant dense<0.000000e+00> : vector<8x32xf32>
    %2 = tpu.matmul %0, %1, %cst {dimension_numbers = #tpu.dot_dimension_numbers<[1], [0], [0], [1], [0, 0, 1, 1], [], []>} : vector<8x8xf32>, vector<8x32xf32>, vector<8x32xf32> -> vector<8x32xf32>
    %c0_3 = arith.constant 0 : index
    %c0_4 = arith.constant 0 : index
    %3 = vector.load %arg3[%c0_3, %c0_4] : memref<1x32xf32, #tpu.memory_space<vmem>>, vector<1x32xf32>
    %4 = vector.broadcast %3 : vector<1x32xf32> to vector<8x32xf32>
    %5 = arith.addf %2, %4 : vector<8x32xf32>
    %cst_5 = arith.constant 0.000000e+00 : f32
    %6 = vector.broadcast %cst_5 : f32 to vector<8x32xf32>
    %7 = arith.cmpf ogt, %5, %6 : vector<8x32xf32>
    %cst_6 = arith.constant 0.00999999977 : f32
    %8 = vector.broadcast %cst_6 : f32 to vector<8x32xf32>
    %9 = arith.mulf %8, %5 : vector<8x32xf32>
    %10 = arith.select %7, %5, %9 : vector<8x32xi1>, vector<8x32xf32>
    %c0_7 = arith.constant 0 : index
    %c0_8 = arith.constant 0 : index
    %11 = vector.load %arg4[%c0_7, %c0_8] : memref<32x8xf32, #tpu.memory_space<vmem>>, vector<32x8xf32>
    %cst_9 = arith.constant dense<0.000000e+00> : vector<8x8xf32>
    %12 = tpu.matmul %10, %11, %cst_9 {dimension_numbers = #tpu.dot_dimension_numbers<[1], [0], [0], [1], [0, 0, 1, 1], [], []>} : vector<8x32xf32>, vector<32x8xf32>, vector<8x8xf32> -> vector<8x8xf32>
    %c0_10 = arith.constant 0 : index
    %c0_11 = arith.constant 0 : index
    %13 = vector.load %arg5[%c0_10, %c0_11] : memref<1x8xf32, #tpu.memory_space<vmem>>, vector<1x8xf32>
    %14 = vector.broadcast %13 : vector<1x8xf32> to vector<8x8xf32>
    %15 = arith.addf %12, %14 : vector<8x8xf32>
    %c0_12 = arith.constant 0 : index
    %c0_13 = arith.constant 0 : index
    %16 = vector.load %arg6[%c0_12, %c0_13] : memref<8x8xf32, #tpu.memory_space<vmem>>, vector<8x8xf32>
    tpu.vector_store %arg6[%c0_12, %c0_13], %15 {strides = array<i32>} : memref<8x8xf32, #tpu.memory_space<vmem>>, vector<8x8xf32>,
    return
  }
  func.func @transform_0(%arg0: i32) -> (i32, i32) {
    %c0_i32 = arith.constant 0 : i32
    %c0_i32_0 = arith.constant 0 : i32
    return %arg0, %c0_i32 : i32, i32
  }
  func.func @transform_1(%arg0: i32) -> (i32, i32) {
    %c0_i32 = arith.constant 0 : i32
    %c0_i32_0 = arith.constant 0 : i32
    %c0_i32_1 = arith.constant 0 : i32
    return %c0_i32, %c0_i32_0 : i32, i32
  }
  func.func @transform_2(%arg0: i32) -> (i32, i32) {
    %c0_i32 = arith.constant 0 : i32
    %c0_i32_0 = arith.constant 0 : i32
    %c0_i32_1 = arith.constant 0 : i32
    return %c0_i32, %c0_i32_0 : i32, i32
  }
  func.func @transform_3(%arg0: i32) -> (i32, i32) {
    %c0_i32 = arith.constant 0 : i32
    %c0_i32_0 = arith.constant 0 : i32
    %c0_i32_1 = arith.constant 0 : i32
    return %c0_i32, %c0_i32_0 : i32, i32
  }
  func.func @transform_4(%arg0: i32) -> (i32, i32) {
    %c0_i32 = arith.constant 0 : i32
    %c0_i32_0 = arith.constant 0 : i32
    %c0_i32_1 = arith.constant 0 : i32
    return %c0_i32, %c0_i32_0 : i32, i32
  }
  func.func @transform_5(%arg0: i32) -> (i32, i32) {
    %c0_i32 = arith.constant 0 : i32
    %c0_i32_0 = arith.constant 0 : i32
    return %arg0, %c0_i32 : i32, i32
  }
}

</mosaic_0001>

<llo_original>
// kernel: tb_model_forward.1
$region0: #{tb_model_forward.1}
  #allocation0 [shape = 'u32[]', space=smem, size = 0x4, offset = 0x4, fixed_abs, tag = 'smem constant byte address 0x4 - core index']
  #allocation1 [shape = 'u32[144,128]{1,0:T(1,128)}', space=vmem, size = 0x12000, scoped, tag = 'internal scratch']
  %s0 = inlined_call_operand.vmem [shape: f32[8,8], index: 0, kind: input, shape index: {}]
  %s1 = inlined_call_operand.vmem [shape: f32[8,32], index: 1, kind: input, shape index: {}]
  %s2 = inlined_call_operand.vmem [shape: f32[1,32], index: 2, kind: input, shape index: {}]
  %s3 = inlined_call_operand.vmem [shape: f32[32,8], index: 3, kind: input, shape index: {}]
  %s4 = inlined_call_operand.vmem [shape: f32[1,8], index: 4, kind: input, shape index: {}]
  %s5 = inlined_call_operand.vmem [shape: f32[8,8], index: 5, kind: output, shape index: {}]
  %s6 = sld [smem:[#allocation0]]
  $region30: #{tb_model_forward.1} parent=0
    _
  %s8 = ssub.s32 1, %s6
  %s9 = scalar_select 0, %s8, %s6
  // Predicated region
  $region2: #{tb_model_forward.1} parent=0 // pred_check
    _
  $region3: #{tb_model_forward.1} parent=0 // pred_check_branch
    %11 = sbr.rel (0) target = $region5
  $region4: #{tb_model_forward.1} parent=0 // pred_region
    _
  $region5: #{tb_model_forward.1} parent=0 // pred_fallthru
    _
  // Predicated region
  $region6: #{tb_model_forward.1} parent=0 // pred_check
    _
  $region7: #{tb_model_forward.1} parent=0 // pred_check_branch
    %13 = sbr.rel (0) target = $region9
  $region8: #{tb_model_forward.1} parent=0 // pred_region
    _
  $region9: #{tb_model_forward.1} parent=0 // pred_fallthru
    _
  // Predicated region
  $region10: #{tb_model_forward.1} parent=0 // pred_check
    _
  $region11: #{tb_model_forward.1} parent=0 // pred_check_branch
    %15 = sbr.rel (0) target = $region13
  $region12: #{tb_model_forward.1} parent=0 // pred_region
    _
  $region13: #{tb_model_forward.1} parent=0 // pred_fallthru
    _
  // Predicated region
  $region14: #{tb_model_forward.1} parent=0 // pred_check
    _
  $region15: #{tb_model_forward.1} parent=0 // pred_check_branch
    %17 = sbr.rel (0) target = $region17
  $region16: #{tb_model_forward.1} parent=0 // pred_region
    _
  $region17: #{tb_model_forward.1} parent=0 // pred_fallthru
    _
  // Predicated region
  $region18: #{tb_model_forward.1} parent=0 // pred_check
    _
  $region19: #{tb_model_forward.1} parent=0 // pred_check_branch
    %19 = sbr.rel (0) target = $region21
  $region20: #{tb_model_forward.1} parent=0 // pred_region
    _
  $region21: #{tb_model_forward.1} parent=0 // pred_fallthru
    _
  %v20 = vld [vmem:[%s0] sm:$0xff]
  %v21 = vld [vmem:[%s1] sm:$0xff]
  %v22 = vld [vmem:[%s2] sm:$0x1]
  %v24 = vlaneseq
  %v25 = vshrl.u32 %v24, 7
  %v26 = vsub.s32 0, %v25
  %v27 = vrot.slane %v22, %v26
  %vm29 = vcmask 64512
  %v31 = vsel %vm29, %v20, 0
  %33 = vmatprep.subr.mxu0 0.0
  %34 = vmatpush1.msra.mxu0 %v21
  %35 = vmatprep.subr.mxu0 0.0
  %36 = vmatpush1.msra.mxu0 0.0
  %37 = vmatprep.subr.mxu0 0.0
  %38 = vmatpush1.msra.mxu0 0.0
  %39 = vmatprep.subr.mxu0 0.0
  %40 = vmatpush1.msra.mxu0 0.0
  %41 = vmatprep.subr.mxu0 0.0
  %42 = vmatpush1.msra.mxu0 0.0
  %43 = vmatprep.subr.mxu0 0.0
  %44 = vmatpush1.msra.mxu0 0.0
  %45 = vmatprep.subr.mxu0 0.0
  %46 = vmatpush1.msra.mxu0 0.0
  %47 = vmatprep.subr.mxu0 0.0
  %48 = vmatpush1.msra.mxu0 0.0
  %49 = vmatprep.subr.mxu0 0.0
  %50 = vmatpush1.msra.mxu0 0.0
  %51 = vmatprep.subr.mxu0 0.0
  %52 = vmatpush1.msra.mxu0 0.0
  %53 = vmatprep.subr.mxu0 0.0
  %54 = vmatpush1.msra.mxu0 0.0
  %55 = vmatprep.subr.mxu0 0.0
  %56 = vmatpush1.msra.mxu0 0.0
  %57 = vmatprep.subr.mxu0 0.0
  %58 = vmatpush1.msra.mxu0 0.0
  %59 = vmatprep.subr.mxu0 0.0
  %60 = vmatpush1.msra.mxu0 0.0
  %61 = vmatprep.subr.mxu0 0.0
  %62 = vmatpush1.msra.mxu0 0.0
  %63 = vmatprep.subr.mxu0 0.0
  %64 = vmatpush1.msra.mxu0 0.0
  %65 = vmatprep.subr.mxu0 0.0
  %66 = vmatpush1.msra.mxu0 0.0
  %67 = vmatprep.subr.mxu0 0.0
  %68 = vmatpush1.msra.mxu0 0.0
  %69 = vmatprep.subr.mxu0 0.0
  %70 = vmatpush1.msra.mxu0 0.0
  %71 = vmatprep.subr.mxu0 0.0
  %72 = vmatpush1.msra.mxu0 0.0
  %73 = vmatprep.subr.mxu0 0.0
  %74 = vmatpush1.msra.mxu0 0.0
  %75 = vmatprep.subr.mxu0 0.0
  %76 = vmatpush1.msra.mxu0 0.0
  %77 = vmatprep.subr.mxu0 0.0
  %78 = vmatpush1.msra.mxu0 0.0
  %79 = vmatprep.subr.mxu0 0.0
  %80 = vmatpush1.msra.mxu0 0.0
  %81 = vmatprep.subr.mxu0 0.0
  %82 = vmatpush1.msra.mxu0 0.0
  %83 = vmatprep.subr.mxu0 0.0
  %84 = vmatpush1.msra.mxu0 0.0
  %85 = vmatprep.subr.mxu0 0.0
  %86 = vmatpush1.msra.mxu0 0.0
  %87 = vmatprep.subr.mxu0 0.0
  %88 = vmatpush1.msra.mxu0 0.0
  %89 = vmatprep.subr.mxu0 0.0
  %90 = vmatpush1.msra.mxu0 0.0
  %91 = vmatprep.subr.mxu0 0.0
  %92 = vmatpush1.msra.mxu0 0.0
  %93 = vmatprep.subr.mxu0 0.0
  %94 = vmatpush1.msra.mxu0 0.0
  %95 = vmatprep.subr.mxu0 0.0
  %96 = vmatpush1.msra.mxu0 0.0
  %97 = vmatprep.mubr.f32.mxu0 0.0
  %98 = vmatmul.mubr.f32.gmra.mrb[0].mxu0 %v31
  %v99 = vpop.f32.mrb[0].mxu0
  %v100 = vadd.f32 %v27, %v99
  %v101 = vpop.f32.mrb[0].mxu0
  %102 = vdwg.mxu0
  %vm103 = vcmp.gt.f32.partialorder %v100, 0.0
  %v104 = vmul.f32 %v100, 0.01
  %v105 = vsel %vm103, %v100, %v104
  %v106 = vld [vmem:[%s3] sm:$0xff]
  %v107 = vld [vmem:[%s3 + $0x8] sm:$0xff]
  %v108 = vld [vmem:[%s3 + $0x10] sm:$0xff]
  %v109 = vld [vmem:[%s3 + $0x18] sm:$0xff]
  %v110 = vld [vmem:[%s4] sm:$0x1]
  %v112 = vlaneseq
  %v113 = vshrl.u32 %v112, 7
  %v114 = vsub.s32 0, %v113
  %v115 = vrot.slane %v110, %v114
  %vm117 = vcmask 261120
  %v119 = vsel %vm117, %v105, 0
  %121 = vmatprep.subr.mxu0 0.0
  %122 = vmatpush1.msra.mxu0 %v106
  %123 = vmatprep.subr.mxu0 0.0
  %124 = vmatpush1.msra.mxu0 %v107
  %125 = vmatprep.subr.mxu0 0.0
  %126 = vmatpush1.msra.mxu0 %v108
  %127 = vmatprep.subr.mxu0 0.0
  %128 = vmatpush1.msra.mxu0 %v109
  %129 = vmatprep.subr.mxu0 0.0
  %130 = vmatpush1.msra.mxu0 0.0
  %131 = vmatprep.subr.mxu0 0.0
  %132 = vmatpush1.msra.mxu0 0.0
  %133 = vmatprep.subr.mxu0 0.0
  %134 = vmatpush1.msra.mxu0 0.0
  %135 = vmatprep.subr.mxu0 0.0
  %136 = vmatpush1.msra.mxu0 0.0
  %137 = vmatprep.subr.mxu0 0.0
  %138 = vmatpush1.msra.mxu0 0.0
  %139 = vmatprep.subr.mxu0 0.0
  %140 = vmatpush1.msra.mxu0 0.0
  %141 = vmatprep.subr.mxu0 0.0
  %142 = vmatpush1.msra.mxu0 0.0
  %143 = vmatprep.subr.mxu0 0.0
  %144 = vmatpush1.msra.mxu0 0.0
  %145 = vmatprep.subr.mxu0 0.0
  %146 = vmatpush1.msra.mxu0 0.0
  %147 = vmatprep.subr.mxu0 0.0
  %148 = vmatpush1.msra.mxu0 0.0
  %149 = vmatprep.subr.mxu0 0.0
  %150 = vmatpush1.msra.mxu0 0.0
  %151 = vmatprep.subr.mxu0 0.0
  %152 = vmatpush1.msra.mxu0 0.0
  %153 = vmatprep.subr.mxu0 0.0
  %154 = vmatpush1.msra.mxu0 0.0
  %155 = vmatprep.subr.mxu0 0.0
  %156 = vmatpush1.msra.mxu0 0.0
  %157 = vmatprep.subr.mxu0 0.0
  %158 = vmatpush1.msra.mxu0 0.0
  %159 = vmatprep.subr.mxu0 0.0
  %160 = vmatpush1.msra.mxu0 0.0
  %161 = vmatprep.subr.mxu0 0.0
  %162 = vmatpush1.msra.mxu0 0.0
  %163 = vmatprep.subr.mxu0 0.0
  %164 = vmatpush1.msra.mxu0 0.0
  %165 = vmatprep.subr.mxu0 0.0
  %166 = vmatpush1.msra.mxu0 0.0
  %167 = vmatprep.subr.mxu0 0.0
  %168 = vmatpush1.msra.mxu0 0.0
  %169 = vmatprep.subr.mxu0 0.0
  %170 = vmatpush1.msra.mxu0 0.0
  %171 = vmatprep.subr.mxu0 0.0
  %172 = vmatpush1.msra.mxu0 0.0
  %173 = vmatprep.subr.mxu0 0.0
  %174 = vmatpush1.msra.mxu0 0.0
  %175 = vmatprep.subr.mxu0 0.0
  %176 = vmatpush1.msra.mxu0 0.0
  %177 = vmatprep.subr.mxu0 0.0
  %178 = vmatpush1.msra.mxu0 0.0
  %179 = vmatprep.subr.mxu0 0.0
  %180 = vmatpush1.msra.mxu0 0.0
  %181 = vmatprep.subr.mxu0 0.0
  %182 = vmatpush1.msra.mxu0 0.0
  %183 = vmatprep.subr.mxu0 0.0
  %184 = vmatpush1.msra.mxu0 0.0
  %185 = vmatprep.mubr.f32.mxu0 0.0
  %186 = vmatmul.mubr.f32.gmra.mrb[0].mxu0 %v119
  %v187 = vpop.f32.mrb[0].mxu0
  %v188 = vadd.f32 %v115, %v187
  %v189 = vpop.f32.mrb[0].mxu0
  %190 = vdwg.mxu0
  %191 = vst.msk [vmem:[%s5] sm:$0xff] %vm29, %v188
  // Predicated region
  $region22: #{tb_model_forward.1} parent=0 // pred_check
    _
  $region23: #{tb_model_forward.1} parent=0 // pred_check_branch
    %193 = sbr.rel (0) target = $region25
  $region24: #{tb_model_forward.1} parent=0 // pred_region
    _
  $region25: #{tb_model_forward.1} parent=0 // pred_fallthru
    _
  // Predicated region
  $region26: #{tb_model_forward.1} parent=0 // pred_check
    _
  $region27: #{tb_model_forward.1} parent=0 // pred_check_branch
    %195 = sbr.rel (0) target = $region29
  $region28: #{tb_model_forward.1} parent=0 // pred_region
    _
  $region29: #{tb_model_forward.1} parent=0 // pred_fallthru
    _

</llo_original>
